<compile_context>
chip_gen: v5e
topology: v5e:2x2
jax: 0.10.0
libtpu: 0.0.40
codegen_flags: <defaults>
</compile_context>

<pallas_src>
import jax
import jax.numpy as jnp
from jax import lax
from jax.experimental import pallas as pl
from jax.experimental.pallas import tpu as pltpu


NN_WIDTH = 50
NN_NUM_LAYERS = 4
N_X, N_Y, N_PAR = 2, 2, 0
IN_DIM = 3 + N_X * N_Y + N_PAR   # 7
OUT_DIM = 1

WIDTH_PAD = 64   # 50 -> 64 (multiple of 8 for f32 sublanes, 16 for bf16 packing)


def _round_up(n, m):
    return ((n + m - 1) // m) * m


def _mlp_kernel(x_ref, w0_ref, wh_ref, bh_ref, w4_ref, b4_ref, o_ref):
    """Full MLP forward for one batch tile.

    x_ref:  (tile, 7)    f32       batch-major input block (batch in sublanes)
    w0_ref: (64, 7)      f32       layer-0 weight, rows zero-padded 50->64
    wh_ref: (3, 64, 64)  bf16/f32  hidden-layer weights (zero-padded)
    bh_ref: (4, 64, 1)   f32       biases of layers 0..3 (zero-padded columns)
    w4_ref: (64, 1)      f32       final-layer weight as a column (zero-padded)
    b4_ref: (1, 1)       f32
    o_ref:  (1, tile)    f32       lane-dense output row
    """
    # Layer 0: (64,7) . (tile,7)^T -> (64, tile).  dot_general contracts the
    # feature axis of both operands (the attention "A @ B^T" pattern), so no
    # transpose of x is materialized and the activation comes out
    # feature-major (batch in lanes).  K=7 is tiny; keep this dot in f32.
    h = lax.dot_general(
        w0_ref[...], x_ref[...],
        dimension_numbers=(((1,), (1,)), ((), ())),
        preferred_element_type=jnp.float32,
    )
    h = jnp.tanh(h + bh_ref[0])

    # Hidden layers 1..3: bf16 (or f32) MXU matmul with f32 accumulation;
    # bias add + tanh stay f32 (EUP).  Static Python unroll.
    w_dtype = wh_ref.dtype
    for k in range(NN_NUM_LAYERS - 1):
        h = jnp.dot(wh_ref[k], h.astype(w_dtype),
                    preferred_element_type=jnp.float32)
        h = jnp.tanh(h + bh_ref[k + 1])

    # Output layer Linear(50 -> 1): VPU multiply + sublane (XLU) reduce instead
    # of an N=1 MXU matmul; result is already a lane-dense (1, tile) row.
    o_ref[...] = (
        jnp.sum(h * w4_ref[...], axis=0, keepdims=True) + b4_ref[...]
    ).astype(o_ref.dtype)


def _prepare_padded_params(params, use_bf16):
    """Pad PyTorch-layout params (W: (out, in), b: (out,)) to aligned shapes."""
    def pad_w(w, rows, cols):
        w = jnp.asarray(w, jnp.float32)
        return jnp.pad(w, ((0, rows - w.shape[0]), (0, cols - w.shape[1])))

    def pad_b(b, rows):
        b = jnp.asarray(b, jnp.float32).reshape(-1, 1)
        return jnp.pad(b, ((0, rows - b.shape[0]), (0, 0)))

    (w0, b0), (w1, b1), (w2, b2), (w3, b3), (w4, b4) = params
    w_dtype = jnp.bfloat16 if use_bf16 else jnp.float32

    w0p = pad_w(w0, WIDTH_PAD, IN_DIM)                               # (64, 7) f32
    whp = jnp.stack([pad_w(w, WIDTH_PAD, WIDTH_PAD)
                     for w in (w1, w2, w3)]).astype(w_dtype)         # (3, 64, 64)
    bhp = jnp.stack([pad_b(b, WIDTH_PAD)
                     for b in (b0, b1, b2, b3)])                     # (4, 64, 1) f32
    w4p = pad_w(jnp.asarray(w4, jnp.float32).reshape(OUT_DIM, NN_WIDTH).T,
                WIDTH_PAD, OUT_DIM)                                  # (64, 1) f32
    b4p = jnp.asarray(b4, jnp.float32).reshape(1, 1)                 # (1, 1)  f32
    return w0p, whp, bhp, w4p, b4p


def master_pinn_s_forward(x, params, *, batch_tile=2048, use_bf16=True):
    """Run the Pallas MLP.

    x: (B, 7) float32. params: list of (W, b) in PyTorch layout (W: (out, in)).
    batch_tile: rows per grid step; must be a multiple of 128 (lane width).
    Sweep 2048/4096/8192 for large collocation batches; VMEM footprint is tiny
    on all generations so no vmem_limit_bytes is needed.
    use_bf16: store hidden weights in bf16 and run hidden matmuls on the bf16
    MXU path (f32 accumulation). Set False for a full-f32 reference path.
    """
    B, D = x.shape
    assert D == IN_DIM
    assert batch_tile % 128 == 0, "batch_tile must be a multiple of 128"

    x = jnp.asarray(x, jnp.float32)

    # Clamp the tile for small batches, then pad B up to a tile multiple.
    tile = min(batch_tile, _round_up(B, 128))
    num_tiles = pl.cdiv(B, tile)
    b_pad = num_tiles * tile
    if b_pad != B:
        # Cheap row pad (only when B is not already a tile multiple); padded
        # rows produce harmless values that are sliced off below.
        x = jnp.pad(x, ((0, b_pad - B), (0, 0)))

    w0p, whp, bhp, w4p, b4p = _prepare_padded_params(params, use_bf16)
    flat = (w0p, whp, bhp, w4p, b4p)

    # Advisory cost estimate for XLA's scheduler.
    flops = 2 * b_pad * (WIDTH_PAD * IN_DIM
                         + (NN_NUM_LAYERS - 1) * WIDTH_PAD * WIDTH_PAD
                         + WIDTH_PAD)
    transcendentals = NN_NUM_LAYERS * WIDTH_PAD * b_pad
    param_bytes = sum(int(a.size) * a.dtype.itemsize for a in flat)
    bytes_accessed = b_pad * (IN_DIM * 4 + 4) + param_bytes

    in_specs = [
        pl.BlockSpec((tile, IN_DIM), lambda i: (i, 0)),   # x: streamed per step
        pl.BlockSpec(w0p.shape, lambda i: (0, 0)),        # resident weights
        pl.BlockSpec(whp.shape, lambda i: (0, 0, 0)),
        pl.BlockSpec(bhp.shape, lambda i: (0, 0, 0)),
        pl.BlockSpec(w4p.shape, lambda i: (0, 0)),
        pl.BlockSpec(b4p.shape, lambda i: (0, 0)),
    ]
    out_spec = pl.BlockSpec((1, tile), lambda i: (0, i))

    out_row = pl.pallas_call(
        _mlp_kernel,
        out_shape=jax.ShapeDtypeStruct((1, b_pad), jnp.float32),
        grid_spec=pltpu.PrefetchScalarGridSpec(
            num_scalar_prefetch=0,
            grid=(num_tiles,),
            in_specs=in_specs,
            out_specs=out_spec,
        ),
        compiler_params=pltpu.CompilerParams(
            # NOTE(v7x): verify in the trace that the batch axis really shards
            # across both TensorCores; if not, switch to pltpu.CORE_PARALLEL.
            dimension_semantics=("parallel",),
        ),
        cost_estimate=pl.CostEstimate(
            flops=flops,
            transcendentals=transcendentals,
            bytes_accessed=bytes_accessed,
        ),
    )(x, *flat)

    # Back to the module's (B, 1) output shape.
    return out_row[0, :B].reshape(B, OUT_DIM)


def init_params(key):
    """Deterministic init mirroring the module's shapes (PyTorch layout).

    Hidden-layer weights use Xavier-normal (as the PyTorch module does); the
    final layer uses a small normal init. Weights are stored (out, in)."""
    dims = [IN_DIM] + [NN_WIDTH] * NN_NUM_LAYERS + [OUT_DIM]
    params = []
    keys = jax.random.split(key, len(dims) - 1)
    for li, (din, dout) in enumerate(zip(dims[:-1], dims[1:])):
        kw, kb = jax.random.split(keys[li])
        std = jnp.sqrt(2.0 / (din + dout))  # xavier normal, gain = 1
        w = std * jax.random.normal(kw, (dout, din), dtype=jnp.float32)
        b = 0.01 * jax.random.normal(kb, (dout,), dtype=jnp.float32)
        params.append((w, b))
    return params


def reference_forward(x, params):
    """Pure-JAX f32 reference (HIGHEST precision so TPU matmuls stay f32)."""
    hp = lax.Precision.HIGHEST
    h = jnp.asarray(x, jnp.float32)
    for (w, b) in params[:-1]:
        h = jnp.tanh(jnp.dot(h, w.T, precision=hp) + b)
    w, b = params[-1]
    return jnp.dot(h, w.T, precision=hp) + b


if __name__ == "__main__":
    key = jax.random.PRNGKey(0)
    k_x, k_p = jax.random.split(key)

    # Small test: B not a multiple of the tile (exercises wrapper batch
    # padding) and > 1 grid step.
    B = 300
    x = jax.random.normal(k_x, (B, IN_DIM), dtype=jnp.float32)
    params = init_params(k_p)

    ref = reference_forward(x, params)

    # Full-f32 path: tight tolerance vs the f32 reference.
    out_f32 = jax.block_until_ready(
        master_pinn_s_forward(x, params, batch_tile=128, use_bf16=False))
    assert out_f32.shape == (B, OUT_DIM)
    assert jnp.allclose(out_f32, ref, atol=1e-3, rtol=1e-3), \
        "f32 kernel mismatch vs JAX reference"

    # Default bf16-matmul perf path: looser tolerance (PINN users should
    # re-validate for their own problem before relying on it).
    out_bf16 = jax.block_until_ready(
        master_pinn_s_forward(x, params, batch_tile=256, use_bf16=True))
    assert out_bf16.shape == (B, OUT_DIM)
    assert jnp.allclose(out_bf16, ref, atol=5e-2, rtol=5e-2), \
        "bf16 kernel mismatch vs JAX reference"

    print("KERNEL_OK")
</pallas_src>

<mosaic_0001>
module attributes {stable_mosaic.version = 11 : i64} {
  func.func @_mlp_kernel(%arg0: i32, %arg1: memref<128x7xf32, #tpu.memory_space<vmem>>, %arg2: memref<64x7xf32, #tpu.memory_space<vmem>>, %arg3: memref<3x64x64xf32, #tpu.memory_space<vmem>>, %arg4: memref<4x64x1xf32, #tpu.memory_space<vmem>>, %arg5: memref<64x1xf32, #tpu.memory_space<vmem>>, %arg6: memref<1x1xf32, #tpu.memory_space<vmem>>, %arg7: memref<1x128xf32, #tpu.memory_space<vmem>>) attributes {dimension_semantics = [#tpu.dimension_semantics<parallel>], iteration_bounds = array<i64: 3>, scalar_prefetch = 0 : i64, scratch_operands = 0 : i64, tpu.core_type = #tpu.core_type<tc>, window_params = [{transform_indices = @transform_0, window_bounds = array<i64: 128, 7>}, {pipeline_mode = #tpu.pipeline_mode<synchronous>, transform_indices = @transform_1, window_bounds = array<i64: 64, 7>}, {pipeline_mode = #tpu.pipeline_mode<synchronous>, transform_indices = @transform_2, window_bounds = array<i64: 3, 64, 64>}, {pipeline_mode = #tpu.pipeline_mode<synchronous>, transform_indices = @transform_3, window_bounds = array<i64: 4, 64, 1>}, {pipeline_mode = #tpu.pipeline_mode<synchronous>, transform_indices = @transform_4, window_bounds = array<i64: 64, 1>}, {pipeline_mode = #tpu.pipeline_mode<synchronous>, transform_indices = @transform_5, window_bounds = array<i64: 1, 1>}, {transform_indices = @transform_6, window_bounds = array<i64: 1, 128>}]} {
    %c0 = arith.constant 0 : index
    %c0_0 = arith.constant 0 : index
    %0 = vector.load %arg2[%c0, %c0_0] : memref<64x7xf32, #tpu.memory_space<vmem>>, vector<64x7xf32>
    %c0_1 = arith.constant 0 : index
    %c0_2 = arith.constant 0 : index
    %1 = vector.load %arg1[%c0_1, %c0_2] : memref<128x7xf32, #tpu.memory_space<vmem>>, vector<128x7xf32>
    %cst = arith.constant dense<0.000000e+00> : vector<64x128xf32>
    %2 = tpu.matmul %0, %1, %cst {dimension_numbers = #tpu.dot_dimension_numbers<[1], [1], [0], [0], [0, 0, 1, 0], [], []>} : vector<64x7xf32>, vector<128x7xf32>, vector<64x128xf32> -> vector<64x128xf32>
    %c0_3 = arith.constant 0 : index
    %c0_4 = arith.constant 0 : index
    %c0_5 = arith.constant 0 : index
    %3 = vector.load %arg4[%c0_3, %c0_4, %c0_5] : memref<4x64x1xf32, #tpu.memory_space<vmem>>, vector<1x64x1xf32>
    %4 = vector.shape_cast %3 : vector<1x64x1xf32> to vector<64x1xf32>
    %5 = vector.broadcast %4 : vector<64x1xf32> to vector<64x128xf32>
    %6 = arith.addf %2, %5 : vector<64x128xf32>
    %7 = math.tanh %6 : vector<64x128xf32>
    %c0_6 = arith.constant 0 : index
    %c0_7 = arith.constant 0 : index
    %c0_8 = arith.constant 0 : index
    %8 = vector.load %arg3[%c0_6, %c0_7, %c0_8] : memref<3x64x64xf32, #tpu.memory_space<vmem>>, vector<1x64x64xf32>
    %9 = vector.shape_cast %8 : vector<1x64x64xf32> to vector<64x64xf32>
    %cst_9 = arith.constant dense<0.000000e+00> : vector<64x128xf32>
    %10 = tpu.matmul %9, %7, %cst_9 {dimension_numbers = #tpu.dot_dimension_numbers<[1], [0], [0], [1], [0, 0, 1, 1], [], []>} : vector<64x64xf32>, vector<64x128xf32>, vector<64x128xf32> -> vector<64x128xf32>
    %c1 = arith.constant 1 : index
    %c0_10 = arith.constant 0 : index
    %c0_11 = arith.constant 0 : index
    %11 = vector.load %arg4[%c1, %c0_10, %c0_11] : memref<4x64x1xf32, #tpu.memory_space<vmem>>, vector<1x64x1xf32>
    %12 = vector.shape_cast %11 : vector<1x64x1xf32> to vector<64x1xf32>
    %13 = vector.broadcast %12 : vector<64x1xf32> to vector<64x128xf32>
    %14 = arith.addf %10, %13 : vector<64x128xf32>
    %15 = math.tanh %14 : vector<64x128xf32>
    %c1_12 = arith.constant 1 : index
    %c0_13 = arith.constant 0 : index
    %c0_14 = arith.constant 0 : index
    %16 = vector.load %arg3[%c1_12, %c0_13, %c0_14] : memref<3x64x64xf32, #tpu.memory_space<vmem>>, vector<1x64x64xf32>
    %17 = vector.shape_cast %16 : vector<1x64x64xf32> to vector<64x64xf32>
    %cst_15 = arith.constant dense<0.000000e+00> : vector<64x128xf32>
    %18 = tpu.matmul %17, %15, %cst_15 {dimension_numbers = #tpu.dot_dimension_numbers<[1], [0], [0], [1], [0, 0, 1, 1], [], []>} : vector<64x64xf32>, vector<64x128xf32>, vector<64x128xf32> -> vector<64x128xf32>
    %c2 = arith.constant 2 : index
    %c0_16 = arith.constant 0 : index
    %c0_17 = arith.constant 0 : index
    %19 = vector.load %arg4[%c2, %c0_16, %c0_17] : memref<4x64x1xf32, #tpu.memory_space<vmem>>, vector<1x64x1xf32>
    %20 = vector.shape_cast %19 : vector<1x64x1xf32> to vector<64x1xf32>
    %21 = vector.broadcast %20 : vector<64x1xf32> to vector<64x128xf32>
    %22 = arith.addf %18, %21 : vector<64x128xf32>
    %23 = math.tanh %22 : vector<64x128xf32>
    %c2_18 = arith.constant 2 : index
    %c0_19 = arith.constant 0 : index
    %c0_20 = arith.constant 0 : index
    %24 = vector.load %arg3[%c2_18, %c0_19, %c0_20] : memref<3x64x64xf32, #tpu.memory_space<vmem>>, vector<1x64x64xf32>
    %25 = vector.shape_cast %24 : vector<1x64x64xf32> to vector<64x64xf32>
    %cst_21 = arith.constant dense<0.000000e+00> : vector<64x128xf32>
    %26 = tpu.matmul %25, %23, %cst_21 {dimension_numbers = #tpu.dot_dimension_numbers<[1], [0], [0], [1], [0, 0, 1, 1], [], []>} : vector<64x64xf32>, vector<64x128xf32>, vector<64x128xf32> -> vector<64x128xf32>
    %c3 = arith.constant 3 : index
    %c0_22 = arith.constant 0 : index
    %c0_23 = arith.constant 0 : index
    %27 = vector.load %arg4[%c3, %c0_22, %c0_23] : memref<4x64x1xf32, #tpu.memory_space<vmem>>, vector<1x64x1xf32>
    %28 = vector.shape_cast %27 : vector<1x64x1xf32> to vector<64x1xf32>
    %29 = vector.broadcast %28 : vector<64x1xf32> to vector<64x128xf32>
    %30 = arith.addf %26, %29 : vector<64x128xf32>
    %31 = math.tanh %30 : vector<64x128xf32>
    %c0_24 = arith.constant 0 : index
    %c0_25 = arith.constant 0 : index
    %32 = vector.load %arg5[%c0_24, %c0_25] : memref<64x1xf32, #tpu.memory_space<vmem>>, vector<64x1xf32>
    %33 = vector.broadcast %32 : vector<64x1xf32> to vector<64x128xf32>
    %34 = arith.mulf %31, %33 : vector<64x128xf32>
    %cst_26 = arith.constant dense<0.000000e+00> : vector<128xf32>
    %35 = vector.multi_reduction <add>, %34, %cst_26 [0] : vector<64x128xf32> to vector<128xf32>
    %36 = vector.shape_cast %35 : vector<128xf32> to vector<1x128xf32>
    %c0_27 = arith.constant 0 : index
    %c0_28 = arith.constant 0 : index
    %37 = vector.load %arg6[%c0_27, %c0_28] : memref<1x1xf32, #tpu.memory_space<vmem>>, vector<1x1xf32>
    %38 = vector.broadcast %37 : vector<1x1xf32> to vector<1x128xf32>
    %39 = arith.addf %36, %38 : vector<1x128xf32>
    %c0_29 = arith.constant 0 : index
    %c0_30 = arith.constant 0 : index
    %40 = vector.load %arg7[%c0_29, %c0_30] : memref<1x128xf32, #tpu.memory_space<vmem>>, vector<1x128xf32>
    tpu.vector_store %arg7[%c0_29, %c0_30], %39 {strides = array<i32>} : memref<1x128xf32, #tpu.memory_space<vmem>>, vector<1x128xf32>,
    return
  }
  func.func @transform_0(%arg0: i32) -> (i32, i32) {
    %c0_i32 = arith.constant 0 : i32
    %c0_i32_0 = arith.constant 0 : i32
    return %arg0, %c0_i32 : i32, i32
  }
  func.func @transform_1(%arg0: i32) -> (i32, i32) {
    %c0_i32 = arith.constant 0 : i32
    %c0_i32_0 = arith.constant 0 : i32
    %c0_i32_1 = arith.constant 0 : i32
    return %c0_i32, %c0_i32_0 : i32, i32
  }
  func.func @transform_2(%arg0: i32) -> (i32, i32, i32) {
    %c0_i32 = arith.constant 0 : i32
    %c0_i32_0 = arith.constant 0 : i32
    %c0_i32_1 = arith.constant 0 : i32
    %c0_i32_2 = arith.constant 0 : i32
    return %c0_i32, %c0_i32_0, %c0_i32_1 : i32, i32, i32
  }
  func.func @transform_3(%arg0: i32) -> (i32, i32, i32) {
    %c0_i32 = arith.constant 0 : i32
    %c0_i32_0 = arith.constant 0 : i32
    %c0_i32_1 = arith.constant 0 : i32
    %c0_i32_2 = arith.constant 0 : i32
    return %c0_i32, %c0_i32_0, %c0_i32_1 : i32, i32, i32
  }
  func.func @transform_4(%arg0: i32) -> (i32, i32) {
    %c0_i32 = arith.constant 0 : i32
    %c0_i32_0 = arith.constant 0 : i32
    %c0_i32_1 = arith.constant 0 : i32
    return %c0_i32, %c0_i32_0 : i32, i32
  }
  func.func @transform_5(%arg0: i32) -> (i32, i32) {
    %c0_i32 = arith.constant 0 : i32
    %c0_i32_0 = arith.constant 0 : i32
    %c0_i32_1 = arith.constant 0 : i32
    return %c0_i32, %c0_i32_0 : i32, i32
  }
  func.func @transform_6(%arg0: i32) -> (i32, i32) {
    %c0_i32 = arith.constant 0 : i32
    %c0_i32_0 = arith.constant 0 : i32
    return %c0_i32, %arg0 : i32, i32
  }
}

</mosaic_0001>

<llo_original>
// kernel: tpu_custom_call.1
$region0: #{tpu_custom_call.1}
  #allocation0 [shape = 'u32[]', space=smem, size = 0x4, offset = 0x4, fixed_abs, tag = 'smem constant byte address 0x4 - core index']
  #allocation1 [shape = 'u32[72,128]{1,0:T(1,128)}', space=vmem, size = 0x9000, scoped, tag = 'internal scratch']
  #allocation2 [shape = 'f32[1,1]{1,0:T(1,128)S(1)}', space=vmem, size = 0x200, scoped, tag = 'scoped memory for tpu_custom_call.1']
  %s0 = inlined_call_operand.vmem [shape: f32[384,7], index: 0, kind: input, shape index: {}]
  %s1 = inlined_call_operand.vmem [shape: f32[64,7], index: 1, kind: input, shape index: {}]
  %s2 = inlined_call_operand.vmem [shape: f32[3,64,64], index: 2, kind: input, shape index: {}]
  %s3 = inlined_call_operand.vmem [shape: f32[4,64,1], index: 3, kind: input, shape index: {}]
  %s4 = inlined_call_operand.vmem [shape: f32[64,1], index: 4, kind: input, shape index: {}]
  %s5 = inlined_call_operand.<no memory space> [shape: f32[1,1], index: 5, kind: input, shape index: {}]
  %s6 = inlined_call_operand.hbm [shape: f32[1,384], index: 6, kind: output, shape index: {}]
  %s7 = sld [smem:[#allocation0]]
  $region57: #{tpu_custom_call.1} parent=0
    _
  %s9 = ssub.s32 1, %s7
  %s10 = scalar_select 0, %s9, %s7
  %v11 = vstv %s5
  %12 = vst [vmem:[#allocation2] sm:$0x1] %v11
  $region1: #{tpu_custom_call.1} parent=0
    #allocation3 [shape = 'u8[1024]{0}', space=vmem, size = 0x400, scoped, tag = 'output window, operand 0']
    #allocation4 [shape = 's32[2]{0}', space=sflag, size = 0x8, scoped, tag = 'scoped memory for tpu_custom_call.1']
    %13 = vsyncpa [#allocation4], 0
    %s14 = scalar_lea.sflag [#allocation4], 1
    %15 = vsyncpa %s14, 0
    loop: start=0, step=1, limit=5
    $region2: #{tpu_custom_call.1} parent=1 // loop_pre_header
      _
    $region3: #{tpu_custom_call.1} parent=1 // loop_header
      %s17 = sphi 0, %s21
      %p18 = scmp.ge.s32.totalorder %s17, 5
      %s27 = sphi 0, %s29
      %s30 = sphi 0, %s27
      %s31 = sphi 0, %s30
      %s47 = sphi 0, %s31
      %s51 = sphi 0, %s51
      %s53 = sphi 0, %s51
      %s54 = sphi 0, %s53
      %s68 = sphi 0, %s54
      %s72 = sphi 0, %s72
      %s74 = sphi 0, %s72
      %s75 = sphi 0, %s74
      %s89 = sphi 0, %s75
      %s93 = sphi 0, %s93
      %s95 = sphi 0, %s93
      %s96 = sphi 0, %s95
      %s110 = sphi 0, %s96
      %s114 = sphi 0, %s114
      %s116 = sphi 0, %s114
      %s117 = sphi 0, %s116
      %s131 = sphi 0, %s117
      %s135 = sphi 0, %s135
      %s137 = sphi 0, %s135
      %s138 = sphi 0, %s137
      %s152 = sphi 0, %s138
      %s158 = sphi 0, %s160
      %s161 = sphi 0, %s158
      %s162 = sphi 0, %s161
      %s178 = sphi 0, %s162
    $region4: #{tpu_custom_call.1} parent=1 // loop_header_branch
      %20 = sbr.rel (%p18) target = $region8
    $region5: #{tpu_custom_call.1} parent=1 // loop_body
      %s22 = ssub.s32 %s17, 1
      %s23 = ssub.s32 %s17, 2
      %s24 = sadd.s32 %s17, 1
      %s25 = ssub.s32 %s17, %s24
      %p26 = scmp.eq.s32.totalorder %s25, 0
      %s28 = sadd.s32 %s27, 1
      %s29 = scalar_select %p26, %s27, %s28
      %p32 = pneg %p26
      %p33 = scmp.eq.s32.totalorder %s17, 2
      %p34 = por %p32, %p33
      %p35 = scmp.ne.s32.totalorder %s27, %s30
      %p36 = scmp.eq.s32.totalorder %s17, 0
      %p37 = por %p35, %p36
      %p38 = scmp.ne.s32.totalorder %s27, %s30
      %p39 = scmp.eq.s32.totalorder %s22, 2
      %p40 = por %p38, %p39
      %p41 = scmp.ne.s32.totalorder %s30, %s31
      %p42 = scmp.eq.s32.totalorder %s22, 0
      %p43 = por %p41, %p42
      %p44 = scmp.ne.s32.totalorder %s30, %s31
      %p45 = scmp.eq.s32.totalorder %s23, 2
      %p46 = por %p44, %p45
      %p48 = scmp.ne.s32.totalorder %s31, %s47
      %p49 = scmp.eq.s32.totalorder %s23, 0
      %p50 = por %p48, %p49
      %s52 = sadd.s32 %s51, 1
      %p55 = scmp.eq.s32.totalorder %s17, 2
      %p56 = scmp.ne.s32.totalorder %s51, %s53
      %p57 = scmp.eq.s32.totalorder %s17, 0
      %p58 = por %p56, %p57
      %p59 = scmp.ne.s32.totalorder %s51, %s53
      %p60 = scmp.eq.s32.totalorder %s22, 2
      %p61 = por %p59, %p60
      %p62 = scmp.ne.s32.totalorder %s53, %s54
      %p63 = scmp.eq.s32.totalorder %s22, 0
      %p64 = por %p62, %p63
      %p65 = scmp.ne.s32.totalorder %s53, %s54
      %p66 = scmp.eq.s32.totalorder %s23, 2
      %p67 = por %p65, %p66
      %p69 = scmp.ne.s32.totalorder %s54, %s68
      %p70 = scmp.eq.s32.totalorder %s23, 0
      %p71 = por %p69, %p70
      %s73 = sadd.s32 %s72, 1
      %p76 = scmp.eq.s32.totalorder %s17, 2
      %p77 = scmp.ne.s32.totalorder %s72, %s74
      %p78 = scmp.eq.s32.totalorder %s17, 0
      %p79 = por %p77, %p78
      %p80 = scmp.ne.s32.totalorder %s72, %s74
      %p81 = scmp.eq.s32.totalorder %s22, 2
      %p82 = por %p80, %p81
      %p83 = scmp.ne.s32.totalorder %s74, %s75
      %p84 = scmp.eq.s32.totalorder %s22, 0
      %p85 = por %p83, %p84
      %p86 = scmp.ne.s32.totalorder %s74, %s75
      %p87 = scmp.eq.s32.totalorder %s23, 2
      %p88 = por %p86, %p87
      %p90 = scmp.ne.s32.totalorder %s75, %s89
      %p91 = scmp.eq.s32.totalorder %s23, 0
      %p92 = por %p90, %p91
      %s94 = sadd.s32 %s93, 1
      %p97 = scmp.eq.s32.totalorder %s17, 2
      %p98 = scmp.ne.s32.totalorder %s93, %s95
      %p99 = scmp.eq.s32.totalorder %s17, 0
      %p100 = por %p98, %p99
      %p101 = scmp.ne.s32.totalorder %s93, %s95
      %p102 = scmp.eq.s32.totalorder %s22, 2
      %p103 = por %p101, %p102
      %p104 = scmp.ne.s32.totalorder %s95, %s96
      %p105 = scmp.eq.s32.totalorder %s22, 0
      %p106 = por %p104, %p105
      %p107 = scmp.ne.s32.totalorder %s95, %s96
      %p108 = scmp.eq.s32.totalorder %s23, 2
      %p109 = por %p107, %p108
      %p111 = scmp.ne.s32.totalorder %s96, %s110
      %p112 = scmp.eq.s32.totalorder %s23, 0
      %p113 = por %p111, %p112
      %s115 = sadd.s32 %s114, 1
      %p118 = scmp.eq.s32.totalorder %s17, 2
      %p119 = scmp.ne.s32.totalorder %s114, %s116
      %p120 = scmp.eq.s32.totalorder %s17, 0
      %p121 = por %p119, %p120
      %p122 = scmp.ne.s32.totalorder %s114, %s116
      %p123 = scmp.eq.s32.totalorder %s22, 2
      %p124 = por %p122, %p123
      %p125 = scmp.ne.s32.totalorder %s116, %s117
      %p126 = scmp.eq.s32.totalorder %s22, 0
      %p127 = por %p125, %p126
      %p128 = scmp.ne.s32.totalorder %s116, %s117
      %p129 = scmp.eq.s32.totalorder %s23, 2
      %p130 = por %p128, %p129
      %p132 = scmp.ne.s32.totalorder %s117, %s131
      %p133 = scmp.eq.s32.totalorder %s23, 0
      %p134 = por %p132, %p133
      %s136 = sadd.s32 %s135, 1
      %p139 = scmp.eq.s32.totalorder %s17, 2
      %p140 = scmp.ne.s32.totalorder %s135, %s137
      %p141 = scmp.eq.s32.totalorder %s17, 0
      %p142 = por %p140, %p141
      %p143 = scmp.ne.s32.totalorder %s135, %s137
      %p144 = scmp.eq.s32.totalorder %s22, 2
      %p145 = por %p143, %p144
      %p146 = scmp.ne.s32.totalorder %s137, %s138
      %p147 = scmp.eq.s32.totalorder %s22, 0
      %p148 = por %p146, %p147
      %p149 = scmp.ne.s32.totalorder %s137, %s138
      %p150 = scmp.eq.s32.totalorder %s23, 2
      %p151 = por %p149, %p150
      %p153 = scmp.ne.s32.totalorder %s138, %s152
      %p154 = scmp.eq.s32.totalorder %s23, 0
      %p155 = por %p153, %p154
      %s156 = ssub.s32 %s17, %s24
      %p157 = scmp.eq.s32.totalorder %s156, 0
      %s159 = sadd.s32 %s158, 1
      %s160 = scalar_select %p157, %s158, %s159
      %p163 = pneg %p157
      %p164 = scmp.eq.s32.totalorder %s17, 2
      %p165 = por %p163, %p164
      %p166 = scmp.ne.s32.totalorder %s158, %s161
      %p167 = scmp.eq.s32.totalorder %s17, 0
      %p168 = por %p166, %p167
      %p169 = scmp.ne.s32.totalorder %s158, %s161
      %p170 = scmp.eq.s32.totalorder %s22, 2
      %p171 = por %p169, %p170
      %p172 = scmp.ne.s32.totalorder %s161, %s162
      %p173 = scmp.eq.s32.totalorder %s22, 0
      %p174 = por %p172, %p173
      %p175 = scmp.ne.s32.totalorder %s161, %s162
      %p176 = scmp.eq.s32.totalorder %s23, 2
      %p177 = por %p175, %p176
      %p179 = scmp.ne.s32.totalorder %s162, %s178
      %p180 = scmp.eq.s32.totalorder %s23, 0
      %p181 = por %p179, %p180
      %p182 = scmp.le.s32.totalorder 1, %s17
      %p183 = scmp.lt.s32.totalorder %s17, 4
      %p184 = pnand %p182, %p183
      %p185 = pneg %p184
      // Predicated region
      $region9: #{tpu_custom_call.1} parent=5 // pred_check
        _
      $region10: #{tpu_custom_call.1} parent=5 // pred_check_branch
        %187 = sbr.rel (%p184) target = $region12
      $region11: #{tpu_custom_call.1} parent=5 // pred_region
        %s188 = ssub.s32 %s17, 1
        // Predicated region
        $region13: #{tpu_custom_call.1} parent=11 // pred_check
          %p189 = pneg %p64
        $region14: #{tpu_custom_call.1} parent=11 // pred_check_branch
          %191 = sbr.rel (%p189) target = $region16
        $region15: #{tpu_custom_call.1} parent=11 // pred_region
          _
        $region16: #{tpu_custom_call.1} parent=11 // pred_fallthru
          _
        // Predicated region
        $region17: #{tpu_custom_call.1} parent=11 // pred_check
          %p192 = pneg %p85
        $region18: #{tpu_custom_call.1} parent=11 // pred_check_branch
          %194 = sbr.rel (%p192) target = $region20
        $region19: #{tpu_custom_call.1} parent=11 // pred_region
          _
        $region20: #{tpu_custom_call.1} parent=11 // pred_fallthru
          _
        // Predicated region
        $region21: #{tpu_custom_call.1} parent=11 // pred_check
          %p195 = pneg %p106
        $region22: #{tpu_custom_call.1} parent=11 // pred_check_branch
          %197 = sbr.rel (%p195) target = $region24
        $region23: #{tpu_custom_call.1} parent=11 // pred_region
          _
        $region24: #{tpu_custom_call.1} parent=11 // pred_fallthru
          _
        // Predicated region
        $region25: #{tpu_custom_call.1} parent=11 // pred_check
          %p198 = pneg %p127
        $region26: #{tpu_custom_call.1} parent=11 // pred_check_branch
          %200 = sbr.rel (%p198) target = $region28
        $region27: #{tpu_custom_call.1} parent=11 // pred_region
          _
        $region28: #{tpu_custom_call.1} parent=11 // pred_fallthru
          _
        // Predicated region
        $region29: #{tpu_custom_call.1} parent=11 // pred_check
          %p201 = pneg %p148
        $region30: #{tpu_custom_call.1} parent=11 // pred_check_branch
          %203 = sbr.rel (%p201) target = $region32
        $region31: #{tpu_custom_call.1} parent=11 // pred_region
          _
        $region32: #{tpu_custom_call.1} parent=11 // pred_fallthru
          _
      $region12: #{tpu_custom_call.1} parent=5 // pred_fallthru
        _
      %p204 = scmp.lt.s32.totalorder %s17, 3
      // Predicated region
      $region33: #{tpu_custom_call.1} parent=5 // pred_check
        %p205 = pneg %p204
      $region34: #{tpu_custom_call.1} parent=5 // pred_check_branch
        %207 = sbr.rel (%p205) target = $region36
      $region35: #{tpu_custom_call.1} parent=5 // pred_region
        // Predicated region
        $region37: #{tpu_custom_call.1} parent=35 // pred_check
          %p208 = pneg %p37
        $region38: #{tpu_custom_call.1} parent=35 // pred_check_branch
          %210 = sbr.rel (%p208) target = $region40
        $region39: #{tpu_custom_call.1} parent=35 // pred_region
          %s211 = smul.u32 16, %s17
          %p212 = scmp.lt.s32.totalorder %s211, 47
          %s213 = scalar_select %p212, %s211, 47
          %s214 = smul.addr %s213, 8
          %s215 = scalar_lea.vmem %s0, %s214
          %s216 = smul.u32 16, %s17
        $region40: #{tpu_custom_call.1} parent=35 // pred_fallthru
          _
      $region36: #{tpu_custom_call.1} parent=5 // pred_fallthru
        _
      %p217 = scmp.le.s32.totalorder 1, %s17
      %p218 = scmp.lt.s32.totalorder %s17, 4
      %p219 = pnand %p217, %p218
      %p220 = pneg %p219
      // Predicated region
      $region41: #{tpu_custom_call.1} parent=5 // pred_check
        _
      $region42: #{tpu_custom_call.1} parent=5 // pred_check_branch
        %222 = sbr.rel (%p219) target = $region44
      $region43: #{tpu_custom_call.1} parent=5 // pred_region
        %s223 = ssub.s32 %s17, 1
        %s224 = smul.u32 16, %s22
        %p225 = scmp.lt.s32.totalorder %s224, 47
        %s226 = scalar_select %p225, %s224, 47
        %s227 = smul.addr %s226, 8
        %s228 = scalar_lea.vmem %s0, %s227
        %p229 = pneg %p43
        %p230 = pneg %p40
        %p231 = pneg %p64
        %p232 = pneg %p61
        %p233 = pneg %p85
        %p234 = pneg %p82
        %p235 = pneg %p106
        %p236 = pneg %p103
        %p237 = pneg %p127
        %p238 = pneg %p124
        %p239 = pneg %p148
        %p240 = pneg %p145
        %p241 = pneg %p174
        %p242 = pneg %p171
        %s243 = sand.u32 %s161, 1
        %s244 = scalar_lea.sflag [#allocation4], %s243
        %s245 = sand.u32 %s161, 1
        %s246 = scalar_lea.vmem [#allocation3], %s245
        %s247 = smul.u32 16, %s22
        %p248 = scmp.lt.s32.totalorder %s247, 47
        %s249 = scalar_select %p248, %s247, 47
        %s250 = smul.addr %s249, 8
        %s251 = scalar_lea.vmem %s0, %s250
        %s252 = smul.u32 16, %s22
        %v253 = vld [vmem:[%s1] sm:$0xff]
        %v254 = vld [vmem:[%s1 + $0x8] sm:$0xff]
        %v255 = vld [vmem:[%s1 + $0x10] sm:$0xff]
        %v256 = vld [vmem:[%s1 + $0x18] sm:$0xff]
        %v257 = vld [vmem:[%s1 + $0x20] sm:$0xff]
        %v258 = vld [vmem:[%s1 + $0x28] sm:$0xff]
        %v259 = vld [vmem:[%s1 + $0x30] sm:$0xff]
        %v260 = vld [vmem:[%s1 + $0x38] sm:$0xff]
        %v261 = vld [vmem:[%s251] sm:$0xff]
        %v262 = vld [vmem:[%s251 + $0x8] sm:$0xff]
        %v263 = vld [vmem:[%s251 + $0x10] sm:$0xff]
        %v264 = vld [vmem:[%s251 + $0x18] sm:$0xff]
        %v265 = vld [vmem:[%s251 + $0x20] sm:$0xff]
        %v266 = vld [vmem:[%s251 + $0x28] sm:$0xff]
        %v267 = vld [vmem:[%s251 + $0x30] sm:$0xff]
        %v268 = vld [vmem:[%s251 + $0x38] sm:$0xff]
        %v269 = vld [vmem:[%s251 + $0x40] sm:$0xff]
        %v270 = vld [vmem:[%s251 + $0x48] sm:$0xff]
        %v271 = vld [vmem:[%s251 + $0x50] sm:$0xff]
        %v272 = vld [vmem:[%s251 + $0x58] sm:$0xff]
        %v273 = vld [vmem:[%s251 + $0x60] sm:$0xff]
        %v274 = vld [vmem:[%s251 + $0x68] sm:$0xff]
        %v275 = vld [vmem:[%s251 + $0x70] sm:$0xff]
        %v276 = vld [vmem:[%s251 + $0x78] sm:$0xff]
        %v277 = vld [vmem:[%s3] sm:$0xff]
        %v278 = vld [vmem:[%s3 + $0x8] sm:$0xff]
        %v279 = vld [vmem:[%s3 + $0x10] sm:$0xff]
        %v280 = vld [vmem:[%s3 + $0x18] sm:$0xff]
        %v281 = vld [vmem:[%s3 + $0x20] sm:$0xff]
        %v282 = vld [vmem:[%s3 + $0x28] sm:$0xff]
        %v283 = vld [vmem:[%s3 + $0x30] sm:$0xff]
        %v284 = vld [vmem:[%s3 + $0x38] sm:$0xff]
        %286 = vset.pattern.permute.xlu0 0
        %287 = vperm.xlu0 %286, %v277
        %v288 = vpop.permute.xlu0 %287
        %291 = vset.pattern.permute.xlu0 0
        %292 = vperm.xlu0 %291, %v278
        %v293 = vpop.permute.xlu0 %292
        %296 = vset.pattern.permute.xlu0 0
        %297 = vperm.xlu0 %296, %v279
        %v298 = vpop.permute.xlu0 %297
        %301 = vset.pattern.permute.xlu0 0
        %302 = vperm.xlu0 %301, %v280
        %v303 = vpop.permute.xlu0 %302
        %306 = vset.pattern.permute.xlu0 0
        %307 = vperm.xlu0 %306, %v281
        %v308 = vpop.permute.xlu0 %307
        %311 = vset.pattern.permute.xlu0 0
        %312 = vperm.xlu0 %311, %v282
        %v313 = vpop.permute.xlu0 %312
        %316 = vset.pattern.permute.xlu0 0
        %317 = vperm.xlu0 %316, %v283
        %v318 = vpop.permute.xlu0 %317
        %321 = vset.pattern.permute.xlu0 0
        %322 = vperm.xlu0 %321, %v284
        %v323 = vpop.permute.xlu0 %322
        %vm325 = vcmask 56320
        %v327 = vsel %vm325, %v253, 0
        %v330 = vsel %vm325, %v254, 0
        %v333 = vsel %vm325, %v255, 0
        %v336 = vsel %vm325, %v256, 0
        %v339 = vsel %vm325, %v257, 0
        %v342 = vsel %vm325, %v258, 0
        %v345 = vsel %vm325, %v259, 0
        %v348 = vsel %vm325, %v260, 0
        %v351 = vsel %vm325, %v261, 0
        %v354 = vsel %vm325, %v262, 0
        %v357 = vsel %vm325, %v263, 0
        %v360 = vsel %vm325, %v264, 0
        %v363 = vsel %vm325, %v265, 0
        %v366 = vsel %vm325, %v266, 0
        %v369 = vsel %vm325, %v267, 0
        %v372 = vsel %vm325, %v268, 0
        %v375 = vsel %vm325, %v269, 0
        %v378 = vsel %vm325, %v270, 0
        %v381 = vsel %vm325, %v271, 0
        %v384 = vsel %vm325, %v272, 0
        %v387 = vsel %vm325, %v273, 0
        %v390 = vsel %vm325, %v274, 0
        %v393 = vsel %vm325, %v275, 0
        %v396 = vsel %vm325, %v276, 0
        %398 = vmatpush.xpose.msra.mxu0 %v396
        %399 = vmatpush.xpose.msra.mxu0 %v393
        %400 = vmatpush.xpose.msra.mxu0 %v390
        %401 = vmatpush.xpose.msra.mxu0 %v387
        %402 = vmatpush.xpose.msra.mxu0 %v384
        %403 = vmatpush.xpose.msra.mxu0 %v381
        %404 = vmatpush.xpose.msra.mxu0 %v378
        %405 = vmatpush.xpose.msra.mxu0 %v375
        %406 = vmatpush.xpose.msra.mxu0 %v372
        %407 = vmatpush.xpose.msra.mxu0 %v369
        %408 = vmatpush.xpose.msra.mxu0 %v366
        %409 = vmatpush.xpose.msra.mxu0 %v363
        %410 = vmatpush.xpose.msra.mxu0 %v360
        %411 = vmatpush.xpose.msra.mxu0 %v357
        %412 = vmatpush.xpose.msra.mxu0 %v354
        %413 = vmatpush.xpose.msra.mxu0 %v351
        %414 = vmatmul.f32.gmra.mxu0 %v327
        %v415 = vpop.f32.mrf.mxu0
        %v416 = vadd.f32 %v288, %v415
        %417 = vmatmul.f32.gmra.mxu0 %v330
        %v418 = vpop.f32.mrf.mxu0
        %v419 = vadd.f32 %v293, %v418
        %420 = vmatmul.f32.gmra.mxu0 %v333
        %v421 = vpop.f32.mrf.mxu0
        %v422 = vadd.f32 %v298, %v421
        %423 = vmatmul.f32.gmra.mxu0 %v336
        %v424 = vpop.f32.mrf.mxu0
        %v425 = vadd.f32 %v303, %v424
        %426 = vmatmul.f32.gmra.mxu0 %v339
        %v427 = vpop.f32.mrf.mxu0
        %v428 = vadd.f32 %v308, %v427
        %429 = vmatmul.f32.gmra.mxu0 %v342
        %v430 = vpop.f32.mrf.mxu0
        %v431 = vadd.f32 %v313, %v430
        %432 = vmatmul.f32.gmra.mxu0 %v345
        %v433 = vpop.f32.mrf.mxu0
        %v434 = vadd.f32 %v318, %v433
        %435 = vmatmul.f32.gmra.mxu0 %v348
        %v436 = vpop.f32.mrf.mxu0
        %v437 = vadd.f32 %v323, %v436
        %438 = vdwg.mxu0
        %v439 = vtanh.pop %v416
        %v440 = vtanh.pop %v419
        %v441 = vtanh.pop %v422
        %v442 = vtanh.pop %v425
        %v443 = vtanh.pop %v428
        %v444 = vtanh.pop %v431
        %v445 = vtanh.pop %v434
        %v446 = vtanh.pop %v437
        %v447 = vld [vmem:[%s2] sm:$0xff]
        %v448 = vld [vmem:[%s2 + $0x8] sm:$0xff]
        %v449 = vld [vmem:[%s2 + $0x10] sm:$0xff]
        %v450 = vld [vmem:[%s2 + $0x18] sm:$0xff]
        %v451 = vld [vmem:[%s2 + $0x20] sm:$0xff]
        %v452 = vld [vmem:[%s2 + $0x28] sm:$0xff]
        %v453 = vld [vmem:[%s2 + $0x30] sm:$0xff]
        %v454 = vld [vmem:[%s2 + $0x38] sm:$0xff]
        %s455 = scalar_lea.vmem %s3, 64
        %v456 = vld [vmem:[%s455] sm:$0xff]
        %v457 = vld [vmem:[%s455 + $0x8] sm:$0xff]
        %v458 = vld [vmem:[%s455 + $0x10] sm:$0xff]
        %v459 = vld [vmem:[%s455 + $0x18] sm:$0xff]
        %v460 = vld [vmem:[%s455 + $0x20] sm:$0xff]
        %v461 = vld [vmem:[%s455 + $0x28] sm:$0xff]
        %v462 = vld [vmem:[%s455 + $0x30] sm:$0xff]
        %v463 = vld [vmem:[%s455 + $0x38] sm:$0xff]
        %465 = vset.pattern.permute.xlu0 0
        %466 = vperm.xlu0 %465, %v456
        %v467 = vpop.permute.xlu0 %466
        %470 = vset.pattern.permute.xlu0 0
        %471 = vperm.xlu0 %470, %v457
        %v472 = vpop.permute.xlu0 %471
        %475 = vset.pattern.permute.xlu0 0
        %476 = vperm.xlu0 %475, %v458
        %v477 = vpop.permute.xlu0 %476
        %480 = vset.pattern.permute.xlu0 0
        %481 = vperm.xlu0 %480, %v459
        %v482 = vpop.permute.xlu0 %481
        %485 = vset.pattern.permute.xlu0 0
        %486 = vperm.xlu0 %485, %v460
        %v487 = vpop.permute.xlu0 %486
        %490 = vset.pattern.permute.xlu0 0
        %491 = vperm.xlu0 %490, %v461
        %v492 = vpop.permute.xlu0 %491
        %495 = vset.pattern.permute.xlu0 0
        %496 = vperm.xlu0 %495, %v462
        %v497 = vpop.permute.xlu0 %496
        %500 = vset.pattern.permute.xlu0 0
        %501 = vperm.xlu0 %500, %v463
        %v502 = vpop.permute.xlu0 %501
        %vm504 = vcmask 523264
        %v506 = vsel %vm504, %v447, 0
        %v509 = vsel %vm504, %v448, 0
        %v512 = vsel %vm504, %v449, 0
        %v515 = vsel %vm504, %v450, 0
        %v518 = vsel %vm504, %v451, 0
        %v521 = vsel %vm504, %v452, 0
        %v524 = vsel %vm504, %v453, 0
        %v527 = vsel %vm504, %v454, 0
        %529 = vmatpush.msra.mxu0 0.0
        %530 = vmatpush.msra.mxu0 0.0
        %531 = vmatpush.msra.mxu0 0.0
        %532 = vmatpush.msra.mxu0 0.0
        %533 = vmatpush.msra.mxu0 0.0
        %534 = vmatpush.msra.mxu0 0.0
        %535 = vmatpush.msra.mxu0 0.0
        %536 = vmatpush.msra.mxu0 0.0
        %537 = vmatpush.msra.mxu0 %v446
        %538 = vmatpush.msra.mxu0 %v445
        %539 = vmatpush.msra.mxu0 %v444
        %540 = vmatpush.msra.mxu0 %v443
        %541 = vmatpush.msra.mxu0 %v442
        %542 = vmatpush.msra.mxu0 %v441
        %543 = vmatpush.msra.mxu0 %v440
        %544 = vmatpush.msra.mxu0 %v439
        %545 = vmatmul.f32.gmra.mxu0 %v506
        %v546 = vpop.f32.mrf.mxu0
        %v547 = vadd.f32 %v467, %v546
        %548 = vmatmul.f32.gmra.mxu0 %v509
        %v549 = vpop.f32.mrf.mxu0
        %v550 = vadd.f32 %v472, %v549
        %551 = vmatmul.f32.gmra.mxu0 %v512
        %v552 = vpop.f32.mrf.mxu0
        %v553 = vadd.f32 %v477, %v552
        %554 = vmatmul.f32.gmra.mxu0 %v515
        %v555 = vpop.f32.mrf.mxu0
        %v556 = vadd.f32 %v482, %v555
        %557 = vmatmul.f32.gmra.mxu0 %v518
        %v558 = vpop.f32.mrf.mxu0
        %v559 = vadd.f32 %v487, %v558
        %560 = vmatmul.f32.gmra.mxu0 %v521
        %v561 = vpop.f32.mrf.mxu0
        %v562 = vadd.f32 %v492, %v561
        %563 = vmatmul.f32.gmra.mxu0 %v524
        %v564 = vpop.f32.mrf.mxu0
        %v565 = vadd.f32 %v497, %v564
        %566 = vmatmul.f32.gmra.mxu0 %v527
        %v567 = vpop.f32.mrf.mxu0
        %v568 = vadd.f32 %v502, %v567
        %569 = vdwg.mxu0
        %v570 = vtanh.pop %v547
        %v571 = vtanh.pop %v550
        %v572 = vtanh.pop %v553
        %v573 = vtanh.pop %v556
        %v574 = vtanh.pop %v559
        %v575 = vtanh.pop %v562
        %v576 = vtanh.pop %v565
        %v577 = vtanh.pop %v568
        %s578 = scalar_lea.vmem %s2, 64
        %v579 = vld [vmem:[%s578] sm:$0xff]
        %v580 = vld [vmem:[%s578 + $0x8] sm:$0xff]
        %v581 = vld [vmem:[%s578 + $0x10] sm:$0xff]
        %v582 = vld [vmem:[%s578 + $0x18] sm:$0xff]
        %v583 = vld [vmem:[%s578 + $0x20] sm:$0xff]
        %v584 = vld [vmem:[%s578 + $0x28] sm:$0xff]
        %v585 = vld [vmem:[%s578 + $0x30] sm:$0xff]
        %v586 = vld [vmem:[%s578 + $0x38] sm:$0xff]
        %s587 = scalar_lea.vmem %s3, 128
        %v588 = vld [vmem:[%s587] sm:$0xff]
        %v589 = vld [vmem:[%s587 + $0x8] sm:$0xff]
        %v590 = vld [vmem:[%s587 + $0x10] sm:$0xff]
        %v591 = vld [vmem:[%s587 + $0x18] sm:$0xff]
        %v592 = vld [vmem:[%s587 + $0x20] sm:$0xff]
        %v593 = vld [vmem:[%s587 + $0x28] sm:$0xff]
        %v594 = vld [vmem:[%s587 + $0x30] sm:$0xff]
        %v595 = vld [vmem:[%s587 + $0x38] sm:$0xff]
        %597 = vset.pattern.permute.xlu0 0
        %598 = vperm.xlu0 %597, %v588
        %v599 = vpop.permute.xlu0 %598
        %602 = vset.pattern.permute.xlu0 0
        %603 = vperm.xlu0 %602, %v589
        %v604 = vpop.permute.xlu0 %603
        %607 = vset.pattern.permute.xlu0 0
        %608 = vperm.xlu0 %607, %v590
        %v609 = vpop.permute.xlu0 %608
        %612 = vset.pattern.permute.xlu0 0
        %613 = vperm.xlu0 %612, %v591
        %v614 = vpop.permute.xlu0 %613
        %617 = vset.pattern.permute.xlu0 0
        %618 = vperm.xlu0 %617, %v592
        %v619 = vpop.permute.xlu0 %618
        %622 = vset.pattern.permute.xlu0 0
        %623 = vperm.xlu0 %622, %v593
        %v624 = vpop.permute.xlu0 %623
        %627 = vset.pattern.permute.xlu0 0
        %628 = vperm.xlu0 %627, %v594
        %v629 = vpop.permute.xlu0 %628
        %632 = vset.pattern.permute.xlu0 0
        %633 = vperm.xlu0 %632, %v595
        %v634 = vpop.permute.xlu0 %633
        %v637 = vsel %vm504, %v579, 0
        %v640 = vsel %vm504, %v580, 0
        %v643 = vsel %vm504, %v581, 0
        %v646 = vsel %vm504, %v582, 0
        %v649 = vsel %vm504, %v583, 0
        %v652 = vsel %vm504, %v584, 0
        %v655 = vsel %vm504, %v585, 0
        %v658 = vsel %vm504, %v586, 0
        %660 = vmatpush.msra.mxu0 0.0
        %661 = vmatpush.msra.mxu0 0.0
        %662 = vmatpush.msra.mxu0 0.0
        %663 = vmatpush.msra.mxu0 0.0
        %664 = vmatpush.msra.mxu0 0.0
        %665 = vmatpush.msra.mxu0 0.0
        %666 = vmatpush.msra.mxu0 0.0
        %667 = vmatpush.msra.mxu0 0.0
        %668 = vmatpush.msra.mxu0 %v577
        %669 = vmatpush.msra.mxu0 %v576
        %670 = vmatpush.msra.mxu0 %v575
        %671 = vmatpush.msra.mxu0 %v574
        %672 = vmatpush.msra.mxu0 %v573
        %673 = vmatpush.msra.mxu0 %v572
        %674 = vmatpush.msra.mxu0 %v571
        %675 = vmatpush.msra.mxu0 %v570
        %676 = vmatmul.f32.gmra.mxu0 %v637
        %v677 = vpop.f32.mrf.mxu0
        %v678 = vadd.f32 %v599, %v677
        %679 = vmatmul.f32.gmra.mxu0 %v640
        %v680 = vpop.f32.mrf.mxu0
        %v681 = vadd.f32 %v604, %v680
        %682 = vmatmul.f32.gmra.mxu0 %v643
        %v683 = vpop.f32.mrf.mxu0
        %v684 = vadd.f32 %v609, %v683
        %685 = vmatmul.f32.gmra.mxu0 %v646
        %v686 = vpop.f32.mrf.mxu0
        %v687 = vadd.f32 %v614, %v686
        %688 = vmatmul.f32.gmra.mxu0 %v649
        %v689 = vpop.f32.mrf.mxu0
        %v690 = vadd.f32 %v619, %v689
        %691 = vmatmul.f32.gmra.mxu0 %v652
        %v692 = vpop.f32.mrf.mxu0
        %v693 = vadd.f32 %v624, %v692
        %694 = vmatmul.f32.gmra.mxu0 %v655
        %v695 = vpop.f32.mrf.mxu0
        %v696 = vadd.f32 %v629, %v695
        %697 = vmatmul.f32.gmra.mxu0 %v658
        %v698 = vpop.f32.mrf.mxu0
        %v699 = vadd.f32 %v634, %v698
        %700 = vdwg.mxu0
        %v701 = vtanh.pop %v678
        %v702 = vtanh.pop %v681
        %v703 = vtanh.pop %v684
        %v704 = vtanh.pop %v687
        %v705 = vtanh.pop %v690
        %v706 = vtanh.pop %v693
        %v707 = vtanh.pop %v696
        %v708 = vtanh.pop %v699
        %s709 = scalar_lea.vmem %s2, 128
        %v710 = vld [vmem:[%s709] sm:$0xff]
        %v711 = vld [vmem:[%s709 + $0x8] sm:$0xff]
        %v712 = vld [vmem:[%s709 + $0x10] sm:$0xff]
        %v713 = vld [vmem:[%s709 + $0x18] sm:$0xff]
        %v714 = vld [vmem:[%s709 + $0x20] sm:$0xff]
        %v715 = vld [vmem:[%s709 + $0x28] sm:$0xff]
        %v716 = vld [vmem:[%s709 + $0x30] sm:$0xff]
        %v717 = vld [vmem:[%s709 + $0x38] sm:$0xff]
        %s718 = scalar_lea.vmem %s3, 192
        %v719 = vld [vmem:[%s718] sm:$0xff]
        %v720 = vld [vmem:[%s718 + $0x8] sm:$0xff]
        %v721 = vld [vmem:[%s718 + $0x10] sm:$0xff]
        %v722 = vld [vmem:[%s718 + $0x18] sm:$0xff]
        %v723 = vld [vmem:[%s718 + $0x20] sm:$0xff]
        %v724 = vld [vmem:[%s718 + $0x28] sm:$0xff]
        %v725 = vld [vmem:[%s718 + $0x30] sm:$0xff]
        %v726 = vld [vmem:[%s718 + $0x38] sm:$0xff]
        %728 = vset.pattern.permute.xlu0 0
        %729 = vperm.xlu0 %728, %v719
        %v730 = vpop.permute.xlu0 %729
        %733 = vset.pattern.permute.xlu0 0
        %734 = vperm.xlu0 %733, %v720
        %v735 = vpop.permute.xlu0 %734
        %738 = vset.pattern.permute.xlu0 0
        %739 = vperm.xlu0 %738, %v721
        %v740 = vpop.permute.xlu0 %739
        %743 = vset.pattern.permute.xlu0 0
        %744 = vperm.xlu0 %743, %v722
        %v745 = vpop.permute.xlu0 %744
        %748 = vset.pattern.permute.xlu0 0
        %749 = vperm.xlu0 %748, %v723
        %v750 = vpop.permute.xlu0 %749
        %753 = vset.pattern.permute.xlu0 0
        %754 = vperm.xlu0 %753, %v724
        %v755 = vpop.permute.xlu0 %754
        %758 = vset.pattern.permute.xlu0 0
        %759 = vperm.xlu0 %758, %v725
        %v760 = vpop.permute.xlu0 %759
        %763 = vset.pattern.permute.xlu0 0
        %764 = vperm.xlu0 %763, %v726
        %v765 = vpop.permute.xlu0 %764
        %v768 = vsel %vm504, %v710, 0
        %v771 = vsel %vm504, %v711, 0
        %v774 = vsel %vm504, %v712, 0
        %v777 = vsel %vm504, %v713, 0
        %v780 = vsel %vm504, %v714, 0
        %v783 = vsel %vm504, %v715, 0
        %v786 = vsel %vm504, %v716, 0
        %v789 = vsel %vm504, %v717, 0
        %791 = vmatpush.msra.mxu0 0.0
        %792 = vmatpush.msra.mxu0 0.0
        %793 = vmatpush.msra.mxu0 0.0
        %794 = vmatpush.msra.mxu0 0.0
        %795 = vmatpush.msra.mxu0 0.0
        %796 = vmatpush.msra.mxu0 0.0
        %797 = vmatpush.msra.mxu0 0.0
        %798 = vmatpush.msra.mxu0 0.0
        %799 = vmatpush.msra.mxu0 %v708
        %800 = vmatpush.msra.mxu0 %v707
        %801 = vmatpush.msra.mxu0 %v706
        %802 = vmatpush.msra.mxu0 %v705
        %803 = vmatpush.msra.mxu0 %v704
        %804 = vmatpush.msra.mxu0 %v703
        %805 = vmatpush.msra.mxu0 %v702
        %806 = vmatpush.msra.mxu0 %v701
        %807 = vmatmul.f32.gmra.mxu0 %v768
        %v808 = vpop.f32.mrf.mxu0
        %v809 = vadd.f32 %v730, %v808
        %810 = vmatmul.f32.gmra.mxu0 %v771
        %v811 = vpop.f32.mrf.mxu0
        %v812 = vadd.f32 %v735, %v811
        %813 = vmatmul.f32.gmra.mxu0 %v774
        %v814 = vpop.f32.mrf.mxu0
        %v815 = vadd.f32 %v740, %v814
        %816 = vmatmul.f32.gmra.mxu0 %v777
        %v817 = vpop.f32.mrf.mxu0
        %v818 = vadd.f32 %v745, %v817
        %819 = vmatmul.f32.gmra.mxu0 %v780
        %v820 = vpop.f32.mrf.mxu0
        %v821 = vadd.f32 %v750, %v820
        %822 = vmatmul.f32.gmra.mxu0 %v783
        %v823 = vpop.f32.mrf.mxu0
        %v824 = vadd.f32 %v755, %v823
        %825 = vmatmul.f32.gmra.mxu0 %v786
        %v826 = vpop.f32.mrf.mxu0
        %v827 = vadd.f32 %v760, %v826
        %828 = vmatmul.f32.gmra.mxu0 %v789
        %v829 = vpop.f32.mrf.mxu0
        %v830 = vadd.f32 %v765, %v829
        %831 = vdwg.mxu0
        %v832 = vtanh.pop %v809
        %v833 = vtanh.pop %v812
        %v834 = vtanh.pop %v815
        %v835 = vtanh.pop %v818
        %v836 = vtanh.pop %v821
        %v837 = vtanh.pop %v824
        %v838 = vtanh.pop %v827
        %v839 = vtanh.pop %v830
        %v840 = vld [vmem:[%s4] sm:$0xff]
        %v841 = vld [vmem:[%s4 + $0x8] sm:$0xff]
        %v842 = vld [vmem:[%s4 + $0x10] sm:$0xff]
        %v843 = vld [vmem:[%s4 + $0x18] sm:$0xff]
        %v844 = vld [vmem:[%s4 + $0x20] sm:$0xff]
        %v845 = vld [vmem:[%s4 + $0x28] sm:$0xff]
        %v846 = vld [vmem:[%s4 + $0x30] sm:$0xff]
        %v847 = vld [vmem:[%s4 + $0x38] sm:$0xff]
        %849 = vset.pattern.permute.xlu0 0
        %850 = vperm.xlu0 %849, %v840
        %v851 = vpop.permute.xlu0 %850
        %854 = vset.pattern.permute.xlu0 0
        %855 = vperm.xlu0 %854, %v841
        %v856 = vpop.permute.xlu0 %855
        %859 = vset.pattern.permute.xlu0 0
        %860 = vperm.xlu0 %859, %v842
        %v861 = vpop.permute.xlu0 %860
        %864 = vset.pattern.permute.xlu0 0
        %865 = vperm.xlu0 %864, %v843
        %v866 = vpop.permute.xlu0 %865
        %869 = vset.pattern.permute.xlu0 0
        %870 = vperm.xlu0 %869, %v844
        %v871 = vpop.permute.xlu0 %870
        %874 = vset.pattern.permute.xlu0 0
        %875 = vperm.xlu0 %874, %v845
        %v876 = vpop.permute.xlu0 %875
        %879 = vset.pattern.permute.xlu0 0
        %880 = vperm.xlu0 %879, %v846
        %v881 = vpop.permute.xlu0 %880
        %884 = vset.pattern.permute.xlu0 0
        %885 = vperm.xlu0 %884, %v847
        %v886 = vpop.permute.xlu0 %885
        %v888 = vmul.f32 %v832, %v851
        %v889 = vmul.f32 %v833, %v856
        %v890 = vmul.f32 %v834, %v861
        %v891 = vmul.f32 %v835, %v866
        %v892 = vmul.f32 %v836, %v871
        %v893 = vmul.f32 %v837, %v876
        %v894 = vmul.f32 %v838, %v881
        %v895 = vmul.f32 %v839, %v886
        %v896 = vadd.f32 %v888, %v889
        %v897 = vadd.f32 %v896, %v890
        %v898 = vadd.f32 %v897, %v891
        %v899 = vadd.f32 %v898, %v892
        %v900 = vadd.f32 %v899, %v893
        %v901 = vadd.f32 %v900, %v894
        %v902 = vadd.f32 %v901, %v895
        %v903 = vrot.slane %v902, 4
        %v904 = vadd.f32 %v902, %v903
        %v905 = vrot.slane %v904, 2
        %v906 = vadd.f32 %v904, %v905
        %v907 = vrot.slane %v906, 1
        %v908 = vadd.f32 %v906, %v907
        %v909 = vld [vmem:[#allocation2] sm:$0x1]
        %911 = vset.pattern.permute.xlu0 0
        %912 = vperm.xlu0 %911, %v909
        %v913 = vpop.permute.xlu0 %912
        %v915 = vperm.slane %v913, 0
        %v916 = vadd.f32 %v908, %v915
        %917 = vst [vmem:[%s246] sm:$0x1] %v916
        %s918 = sand.u32 %s161, 1
        %s919 = scalar_lea.sflag [#allocation4], %s918
        %s920 = sand.u32 %s161, 1
        %s921 = scalar_lea.vmem [#allocation3], %s920
        // Predicated region
        $region45: #{tpu_custom_call.1} parent=43 // pred_check
          %p922 = pneg %p171
        $region46: #{tpu_custom_call.1} parent=43 // pred_check_branch
          %924 = sbr.rel (%p922) target = $region48
        $region47: #{tpu_custom_call.1} parent=43 // pred_region
          %926 = vsyncadd %s919, 0
          %s927 = scalar_lea.hbm %s6, %s22
          %s929 = sshll.u32 %s921, 4
          %s930 = int_to_ptr.vmem [resolvable:$true] %s929
          %s931 = sshll.u32 %s927, 4
          %s932 = int_to_ptr.hbm [resolvable:$true] %s931
          %934 = dma.vmem_to_hbm [thread:$0]  %s930, 16, %s932, %s919
        $region48: #{tpu_custom_call.1} parent=43 // pred_fallthru
          _
      $region44: #{tpu_custom_call.1} parent=5 // pred_fallthru
        _
      %p935 = scmp.le.s32.totalorder 2, %s17
      // Predicated region
      $region49: #{tpu_custom_call.1} parent=5 // pred_check
        %p936 = pneg %p935
      $region50: #{tpu_custom_call.1} parent=5 // pred_check_branch
        %938 = sbr.rel (%p936) target = $region52
      $region51: #{tpu_custom_call.1} parent=5 // pred_region
        %s939 = ssub.s32 %s17, 2
        // Predicated region
        $region53: #{tpu_custom_call.1} parent=51 // pred_check
          %p940 = pneg %p177
        $region54: #{tpu_custom_call.1} parent=51 // pred_check_branch
          %942 = sbr.rel (%p940) target = $region56
        $region55: #{tpu_custom_call.1} parent=51 // pred_region
          %s943 = sand.u32 %s162, 1
          %s944 = scalar_lea.sflag [#allocation4], %s943
          %s945 = sand.u32 %s162, 1
          %s946 = scalar_lea.vmem [#allocation3], %s945
          %948 = dma.done %s944, 16
        $region56: #{tpu_custom_call.1} parent=51 // pred_fallthru
          _
      $region52: #{tpu_custom_call.1} parent=5 // pred_fallthru
        _
    $region6: #{tpu_custom_call.1} parent=1 // loop_footer
      %s21 = sadd.s32 1, %s17
    $region7: #{tpu_custom_call.1} parent=1 // loop_footer_branch
      %16 = sbr.rel target = $region3
    $region8: #{tpu_custom_call.1} parent=1 // loop_exit
      _
    %949 = vsyncpa [#allocation4], 1
    %s950 = scalar_lea.sflag [#allocation4], 1
    %951 = vsyncpa %s950, 1

</llo_original>
